<compile_context>
chip_gen: v5e
topology: v5e:2x2
jax: 0.10.0
libtpu: 0.0.40
codegen_flags: <defaults>
</compile_context>

<pallas_src>
import functools

import jax
import jax.numpy as jnp
from jax.experimental import pallas as pl
from jax.experimental.pallas import tpu as pltpu

BN_EPS = 1e-5
LANE = 128
SUBLANE = 8


def _round_up(v, m):
    return ((v + m - 1) // m) * m


def _vmem_cap_bytes():
    """Physical VMEM per TensorCore with headroom; generation-aware with a safe fallback."""
    try:
        cap = int(pltpu.get_tpu_info().vmem_capacity_bytes)
    except Exception:
        cap = 64 << 20  # v7x physical size: safe lower bound for every generation
    return int(cap * 0.9)


def _pick_tile(wp, wbytes, cap):
    """Largest feature-column tile whose double-buffered weight slab stays well under cap."""
    for tn in (512, 256, 128):
        if wp % tn == 0 and 2 * wp * tn * wbytes <= cap // 3:
            return tn
    return 128


# --------------------------- kernel 1: linear1 -> ReLU -> BN ---------------------------
def _lin1_relu_bn_kernel(x_ref, w1_ref, vec_ref, h_ref, *, n_valid):
    x = x_ref[...]                                   # (Np, Wp) f32, whole-resident in VMEM

    b1 = vec_ref[0:1, :]                             # packed rows: 0=b1 1=b2 2=gamma 3=beta
    gamma = vec_ref[2:3, :]
    beta = vec_ref[3:4, :]

    # linear1 column tile + ReLU (MXU, f32 accumulation).
    h = jnp.dot(x.astype(w1_ref.dtype), w1_ref[...],
                preferred_element_type=jnp.float32) + b1     # (Np, tn)
    h = jnp.maximum(h, 0.0)

    # BatchNorm1d train-mode batch statistics (biased variance), per feature column, f32.
    n_pad = x.shape[0]
    if n_valid == n_pad:
        mean = jnp.mean(h, axis=0, keepdims=True)
        hc = h - mean
        var = jnp.mean(hc * hc, axis=0, keepdims=True)
    else:
        # Batch axis was padded: mask padded rows out of the statistics.
        row = jax.lax.broadcasted_iota(jnp.int32, (n_pad, 1), 0)
        mask = (row < n_valid).astype(jnp.float32)
        inv_n = 1.0 / float(n_valid)
        mean = jnp.sum(h * mask, axis=0, keepdims=True) * inv_n
        hc = h - mean
        hcm = hc * mask
        var = jnp.sum(hcm * hcm, axis=0, keepdims=True) * inv_n

    scale = jax.lax.rsqrt(var + BN_EPS) * gamma      # gamma folded into the (1, tn) scale
    h_ref[...] = (hc * scale + beta).astype(h_ref.dtype)


# --------------------------- kernel 2: linear2 -> residual ReLU ------------------------
def _lin2_residual_kernel(h_ref, x_ref, w2_ref, vec_ref, o_ref):
    b2 = vec_ref[1:2, :]
    y = jnp.dot(h_ref[...], w2_ref[...], preferred_element_type=jnp.float32)  # (Np, tn)
    o_ref[...] = jnp.maximum(y + b2 + x_ref[...], 0.0)


# ------------------------------------ wrappers ------------------------------------------
def prepare_params(w1, b1, w2, b2, gamma, beta, *, use_bf16=True):
    """Pad / pack / cast parameters ONCE (hoisted out of the per-call hot path).

    w1/w2 are (in, out) = nn.Linear.weight.T.  Returns arrays in the padded lane-dense
    layout: weights (Wp, Wp) in bf16 (default, all generations) or f32, and the four
    per-feature vectors packed into one (4, Wp) f32 slab (one DMA instead of four)."""
    W = w1.shape[0]
    Wp = _round_up(W, LANE)
    w_dtype = jnp.bfloat16 if use_bf16 else jnp.float32

    def pad2(a):
        return jnp.pad(a, ((0, Wp - a.shape[0]), (0, Wp - a.shape[1])))

    w1p = pad2(w1.astype(jnp.float32)).astype(w_dtype)   # zero-padded rows/cols
    w2p = pad2(w2.astype(jnp.float32)).astype(w_dtype)
    vecs = jnp.stack([jnp.ravel(b1), jnp.ravel(b2),
                      jnp.ravel(gamma), jnp.ravel(beta)]).astype(jnp.float32)
    vecs = jnp.pad(vecs, ((0, 0), (0, Wp - W)))
    return dict(w1=w1p, w2=w2p, vecs=vecs, width=W, width_padded=Wp)


def resblock_apply_padded(xp, params, *, n_valid):
    """Apply one ResBlock in the padded lane-dense layout.

    xp: (Np, Wp) f32 with zero padded feature columns.  Returns (Np, Wp) f32 in the same
    layout, so stacked ResBlocks chain without per-layer pad/slice HBM round trips."""
    Np, Wp = xp.shape
    w1p, w2p, vecs = params["w1"], params["w2"], params["vecs"]
    wbytes = w1p.dtype.itemsize

    cap = _vmem_cap_bytes()
    tn = _pick_tile(Wp, wbytes, cap)
    n_tiles = Wp // tn

    # VMEM budget: whole-resident x/h + double-buffered weight/vec/x/out tiles + slack.
    resident = Np * Wp * (4 + wbytes)
    per_step = 2 * (Wp * tn * wbytes + 4 * tn * 4 + 2 * Np * tn * 4)
    vmem_limit = int(min(cap, max(int(1.5 * (resident + per_step)), 16 << 20)))

    cparams = pltpu.CompilerParams(
        dimension_semantics=("parallel",),   # feature-column tiles are independent -> megacore
        vmem_limit_bytes=vmem_limit,
    )

    col_tile = lambda j: (0, j)

    # ---- pass 1: h = BN(ReLU(x @ W1 + b1)), streaming W1 column tiles ----
    flops1 = 2 * n_valid * Wp * Wp + 8 * n_valid * Wp
    bytes1 = Np * Wp * 4 + Wp * Wp * wbytes + 4 * Wp * 4 + Np * Wp * wbytes
    h = pl.pallas_call(
        functools.partial(_lin1_relu_bn_kernel, n_valid=n_valid),
        out_shape=jax.ShapeDtypeStruct((Np, Wp), w1p.dtype),
        grid=(n_tiles,),
        in_specs=[
            pl.BlockSpec(memory_space=pltpu.MemorySpace.VMEM),  # x: whole array, single copy
            pl.BlockSpec((Wp, tn), col_tile),                   # W1 column tile (pipelined)
            pl.BlockSpec((4, tn), col_tile),                    # packed b1/b2/gamma/beta tile
        ],
        out_specs=pl.BlockSpec((Np, tn), col_tile),
        compiler_params=cparams,
        cost_estimate=pl.CostEstimate(flops=flops1, transcendentals=Wp,
                                      bytes_accessed=bytes1),
    )(xp, w1p, vecs)

    # ---- pass 2: out = ReLU(h @ W2 + b2 + x), streaming W2 column tiles ----
    flops2 = 2 * n_valid * Wp * Wp + 3 * n_valid * Wp
    bytes2 = Np * Wp * wbytes + Np * Wp * 4 + Wp * Wp * wbytes + 4 * Wp * 4 + Np * Wp * 4
    out = pl.pallas_call(
        _lin2_residual_kernel,
        out_shape=jax.ShapeDtypeStruct((Np, Wp), jnp.float32),
        grid=(n_tiles,),
        in_specs=[
            pl.BlockSpec(memory_space=pltpu.MemorySpace.VMEM),  # h: whole array, single copy
            pl.BlockSpec((Np, tn), col_tile),                   # x residual column tile
            pl.BlockSpec((Wp, tn), col_tile),                   # W2 column tile (pipelined)
            pl.BlockSpec((4, tn), col_tile),                    # packed vectors tile
        ],
        out_specs=pl.BlockSpec((Np, tn), col_tile),
        compiler_params=cparams,
        cost_estimate=pl.CostEstimate(flops=flops2, transcendentals=0,
                                      bytes_accessed=bytes2),
    )(h, xp, w2p, vecs)
    return out


def resblock_forward(x, params):
    """Convenience wrapper: pad x, run the padded apply, slice back.  When stacking
    ResBlocks, keep activations padded and call resblock_apply_padded directly."""
    N, W = x.shape
    assert W == params["width"]
    Np = _round_up(N, SUBLANE)
    Wp = params["width_padded"]
    xp = jnp.pad(x.astype(jnp.float32), ((0, Np - N), (0, Wp - W)))
    out = resblock_apply_padded(xp, params, n_valid=N)
    return out[:N, :W]


def reference_forward(x, w1, b1, w2, b2, gamma, beta):
    h = jnp.maximum(x @ w1 + b1, 0.0)
    mean = jnp.mean(h, axis=0, keepdims=True)
    var = jnp.mean((h - mean) ** 2, axis=0, keepdims=True)
    h = (h - mean) / jnp.sqrt(var + BN_EPS) * gamma + beta
    h = h @ w2 + b2
    return jnp.maximum(h + x, 0.0)


if __name__ == "__main__":
    batch, width = 8, 32

    key = jax.random.PRNGKey(0)
    kx, kw1, kb1, kw2, kb2, kg, kb = jax.random.split(key, 7)

    x = jax.random.normal(kx, (batch, width), dtype=jnp.float32)

    # PyTorch-like uniform(-1/sqrt(W), 1/sqrt(W)) init; weights built (out, in) then transposed.
    bound = 1.0 / jnp.sqrt(width)
    w1_oi = jax.random.uniform(kw1, (width, width), minval=-bound, maxval=bound, dtype=jnp.float32)
    b1 = jax.random.uniform(kb1, (1, width), minval=-bound, maxval=bound, dtype=jnp.float32)
    w2_oi = jax.random.uniform(kw2, (width, width), minval=-bound, maxval=bound, dtype=jnp.float32)
    b2 = jax.random.uniform(kb2, (1, width), minval=-bound, maxval=bound, dtype=jnp.float32)
    gamma = jnp.ones((1, width), jnp.float32) + 0.1 * jax.random.normal(kg, (1, width), dtype=jnp.float32)
    beta = 0.1 * jax.random.normal(kb, (1, width), dtype=jnp.float32)

    w1 = w1_oi.T  # (in, out)
    w2 = w2_oi.T

    ref = reference_forward(x, w1, b1, w2, b2, gamma, beta)

    # f32 matmul path (correctness-only): must match the f32 reference tightly.
    params_f32 = prepare_params(w1, b1, w2, b2, gamma, beta, use_bf16=False)
    out_f32 = jax.block_until_ready(resblock_forward(x, params_f32))
    assert out_f32.shape == (batch, width)
    assert jnp.allclose(out_f32, ref, atol=1e-5, rtol=1e-5), "f32 path mismatch vs reference"

    # bf16 MXU-operand fast path (default on all generations, incl. v5e).
    params_bf16 = prepare_params(w1, b1, w2, b2, gamma, beta, use_bf16=True)
    out_bf16 = jax.block_until_ready(resblock_forward(x, params_bf16))
    assert out_bf16.shape == (batch, width)
    assert jnp.allclose(out_bf16, ref, atol=5e-2, rtol=5e-2), "bf16 path mismatch vs reference"

    # Ragged batch: exercises the masked BN statistics over padded batch rows.
    x_small = x[:5]
    ref_small = reference_forward(x_small, w1, b1, w2, b2, gamma, beta)
    out_small = jax.block_until_ready(resblock_forward(x_small, params_f32))
    assert jnp.allclose(out_small, ref_small, atol=1e-5, rtol=1e-5), "masked-batch mismatch"

    # Stacked blocks staying in the padded lane-dense layout (no per-layer pad/slice).
    Np = _round_up(batch, SUBLANE)
    Wp = params_f32["width_padded"]
    xp = jnp.pad(x, ((0, Np - batch), (0, Wp - width)))
    hp = resblock_apply_padded(xp, params_f32, n_valid=batch)
    hp = resblock_apply_padded(hp, params_f32, n_valid=batch)
    out_stack = jax.block_until_ready(hp)[:batch, :width]
    ref_stack = reference_forward(ref, w1, b1, w2, b2, gamma, beta)
    assert jnp.allclose(out_stack, ref_stack, atol=1e-4, rtol=1e-4), "stacked-layout mismatch"

    print("KERNEL_OK")
</pallas_src>

<mosaic_0001>
module attributes {stable_mosaic.version = 11 : i64} {
  func.func @_lin1_relu_bn_kernel(%arg0: i32, %arg1: memref<8x128xf32, #tpu.memory_space<vmem>>, %arg2: memref<128x128xf32, #tpu.memory_space<vmem>>, %arg3: memref<4x128xf32, #tpu.memory_space<vmem>>, %arg4: memref<8x128xf32, #tpu.memory_space<vmem>>) attributes {dimension_semantics = [#tpu.dimension_semantics<parallel>], iteration_bounds = array<i64: 1>, scalar_prefetch = 0 : i64, scratch_operands = 0 : i64, tpu.core_type = #tpu.core_type<tc>, window_params = [{pipeline_mode = #tpu.pipeline_mode<synchronous>, transform_indices = @transform_0, window_bounds = array<i64: 8, 128>}, {transform_indices = @transform_1, window_bounds = array<i64: 128, 128>}, {transform_indices = @transform_2, window_bounds = array<i64: 4, 128>}, {transform_indices = @transform_3, window_bounds = array<i64: 8, 128>}]} {
    %c0 = arith.constant 0 : index
    %c0_0 = arith.constant 0 : index
    %0 = vector.load %arg1[%c0, %c0_0] : memref<8x128xf32, #tpu.memory_space<vmem>>, vector<8x128xf32>
    %c0_1 = arith.constant 0 : index
    %c0_2 = arith.constant 0 : index
    %1 = vector.load %arg3[%c0_1, %c0_2] : memref<4x128xf32, #tpu.memory_space<vmem>>, vector<1x128xf32>
    %c2 = arith.constant 2 : index
    %c0_3 = arith.constant 0 : index
    %2 = vector.load %arg3[%c2, %c0_3] : memref<4x128xf32, #tpu.memory_space<vmem>>, vector<1x128xf32>
    %c3 = arith.constant 3 : index
    %c0_4 = arith.constant 0 : index
    %3 = vector.load %arg3[%c3, %c0_4] : memref<4x128xf32, #tpu.memory_space<vmem>>, vector<1x128xf32>
    %c0_5 = arith.constant 0 : index
    %c0_6 = arith.constant 0 : index
    %4 = vector.load %arg2[%c0_5, %c0_6] : memref<128x128xf32, #tpu.memory_space<vmem>>, vector<128x128xf32>
    %cst = arith.constant dense<0.000000e+00> : vector<8x128xf32>
    %5 = tpu.matmul %0, %4, %cst {dimension_numbers = #tpu.dot_dimension_numbers<[1], [0], [0], [1], [0, 0, 1, 1], [], []>} : vector<8x128xf32>, vector<128x128xf32>, vector<8x128xf32> -> vector<8x128xf32>
    %6 = vector.broadcast %1 : vector<1x128xf32> to vector<8x128xf32>
    %7 = arith.addf %5, %6 : vector<8x128xf32>
    %cst_7 = arith.constant 0.000000e+00 : f32
    %8 = vector.broadcast %cst_7 : f32 to vector<8x128xf32>
    %9 = arith.maximumf %7, %8 : vector<8x128xf32>
    %cst_8 = arith.constant dense<0.000000e+00> : vector<128xf32>
    %10 = vector.multi_reduction <add>, %9, %cst_8 [0] : vector<8x128xf32> to vector<128xf32>
    %11 = vector.shape_cast %10 : vector<128xf32> to vector<1x128xf32>
    %cst_9 = arith.constant 8.000000e+00 : f32
    %12 = vector.broadcast %cst_9 : f32 to vector<1x128xf32>
    %13 = arith.divf %11, %12 : vector<1x128xf32>
    %14 = vector.broadcast %13 : vector<1x128xf32> to vector<8x128xf32>
    %15 = arith.subf %9, %14 : vector<8x128xf32>
    %16 = arith.mulf %15, %15 : vector<8x128xf32>
    %cst_10 = arith.constant dense<0.000000e+00> : vector<128xf32>
    %17 = vector.multi_reduction <add>, %16, %cst_10 [0] : vector<8x128xf32> to vector<128xf32>
    %18 = vector.shape_cast %17 : vector<128xf32> to vector<1x128xf32>
    %cst_11 = arith.constant 8.000000e+00 : f32
    %19 = vector.broadcast %cst_11 : f32 to vector<1x128xf32>
    %20 = arith.divf %18, %19 : vector<1x128xf32>
    %cst_12 = arith.constant 9.99999974E-6 : f32
    %21 = vector.broadcast %cst_12 : f32 to vector<1x128xf32>
    %22 = arith.addf %20, %21 : vector<1x128xf32>
    %23 = math.rsqrt %22 : vector<1x128xf32>
    %24 = arith.mulf %23, %2 : vector<1x128xf32>
    %25 = vector.broadcast %24 : vector<1x128xf32> to vector<8x128xf32>
    %26 = arith.mulf %15, %25 : vector<8x128xf32>
    %27 = vector.broadcast %3 : vector<1x128xf32> to vector<8x128xf32>
    %28 = arith.addf %26, %27 : vector<8x128xf32>
    %c0_13 = arith.constant 0 : index
    %c0_14 = arith.constant 0 : index
    %29 = vector.load %arg4[%c0_13, %c0_14] : memref<8x128xf32, #tpu.memory_space<vmem>>, vector<8x128xf32>
    tpu.vector_store %arg4[%c0_13, %c0_14], %28 {strides = array<i32>} : memref<8x128xf32, #tpu.memory_space<vmem>>, vector<8x128xf32>,
    return
  }
  func.func @transform_0(%arg0: i32) -> (i32, i32) {
    %c0_i32 = arith.constant 0 : i32
    %c0_i32_0 = arith.constant 0 : i32
    %c0_i32_1 = arith.constant 0 : i32
    return %c0_i32, %c0_i32_0 : i32, i32
  }
  func.func @transform_1(%arg0: i32) -> (i32, i32) {
    %c0_i32 = arith.constant 0 : i32
    %c0_i32_0 = arith.constant 0 : i32
    return %c0_i32, %arg0 : i32, i32
  }
  func.func @transform_2(%arg0: i32) -> (i32, i32) {
    %c0_i32 = arith.constant 0 : i32
    %c0_i32_0 = arith.constant 0 : i32
    return %c0_i32, %arg0 : i32, i32
  }
  func.func @transform_3(%arg0: i32) -> (i32, i32) {
    %c0_i32 = arith.constant 0 : i32
    %c0_i32_0 = arith.constant 0 : i32
    return %c0_i32, %arg0 : i32, i32
  }
}

</mosaic_0001>

<llo_original>
// kernel: tpu_custom_call.1
$region0: #{tpu_custom_call.1}
  #allocation0 [shape = 'u32[]', space=smem, size = 0x4, offset = 0x4, fixed_abs, tag = 'smem constant byte address 0x4 - core index']
  #allocation1 [shape = 'u32[72,128]{1,0:T(1,128)}', space=vmem, size = 0x9000, scoped, tag = 'internal scratch']
  %s0 = inlined_call_operand.hbm [shape: f32[8,128], index: 0, kind: input, shape index: {}]
  %s1 = inlined_call_operand.hbm [shape: f32[128,128], index: 1, kind: input, shape index: {}]
  %s2 = inlined_call_operand.hbm [shape: f32[4,128], index: 2, kind: input, shape index: {}]
  %s3 = inlined_call_operand.hbm [shape: f32[8,128], index: 3, kind: output, shape index: {}]
  %s4 = sld [smem:[#allocation0]]
  $region34: #{tpu_custom_call.1} parent=0
    _
  %s6 = ssub.s32 1, %s4
  %s7 = scalar_select 0, %s6, %s4
  $region1: #{tpu_custom_call.1} parent=0
    #allocation2 [shape = 'u8[4096]{0}', space=vmem, size = 0x1000, scoped, tag = 'input window, operand 0, single buffered']
    #allocation3 [shape = 's32[1]{0}', space=sflag, size = 0x4, scoped, tag = 'scoped memory for tpu_custom_call.1']
    #allocation4 [shape = 's32[1]{0}', space=sflag, size = 0x4, scoped, tag = 'scoped memory for tpu_custom_call.1']
    #allocation5 [shape = 'u8[65536]{0}', space=vmem, size = 0x10000, scoped, tag = 'input window, operand 1, single buffered']
    #allocation6 [shape = 's32[1]{0}', space=sflag, size = 0x4, scoped, tag = 'scoped memory for tpu_custom_call.1']
    #allocation7 [shape = 'u8[2048]{0}', space=vmem, size = 0x800, scoped, tag = 'input window, operand 2, single buffered']
    #allocation8 [shape = 'u8[4096]{0}', space=vmem, size = 0x1000, scoped, tag = 'output window, operand 0, single buffered']
    %8 = vsyncpa [#allocation3], 0
    %9 = vsyncpa [#allocation6], 0
    %10 = vsyncpa [#allocation4], 0
    // Predicated region
    $region2: #{tpu_custom_call.1} parent=1 // pred_check
      _
    $region3: #{tpu_custom_call.1} parent=1 // pred_check_branch
      %12 = sbr.rel (0) target = $region5
    $region4: #{tpu_custom_call.1} parent=1 // pred_region
      %14 = vsyncadd [#allocation3], 0
      %s16 = sshll.u32 %s0, 4
      %s17 = int_to_ptr.hbm [resolvable:$true] %s16
      %s18 = sshll.u32 [#allocation2], 4
      %s19 = int_to_ptr.vmem [resolvable:$true] %s18
      %21 = dma.hbm_to_vmem [thread:$0]  %s17, 128, %s19, [#allocation3]
    $region5: #{tpu_custom_call.1} parent=1 // pred_fallthru
      _
    // Predicated region
    $region6: #{tpu_custom_call.1} parent=1 // pred_check
      _
    $region7: #{tpu_custom_call.1} parent=1 // pred_check_branch
      %23 = sbr.rel (0) target = $region9
    $region8: #{tpu_custom_call.1} parent=1 // pred_region
      %25 = vsyncadd [#allocation6], 0
      %s26 = sshll.u32 %s1, 4
      %s27 = int_to_ptr.hbm [resolvable:$true] %s26
      %s28 = sshll.u32 [#allocation5], 4
      %s29 = int_to_ptr.vmem [resolvable:$true] %s28
      %34 = dma.hbm_to_vmem [thread:$0]  %s27, 2048, %s29, [#allocation6], 128, 128, 8
    $region9: #{tpu_custom_call.1} parent=1 // pred_fallthru
      _
    // Predicated region
    $region10: #{tpu_custom_call.1} parent=1 // pred_check
      _
    $region11: #{tpu_custom_call.1} parent=1 // pred_check_branch
      %36 = sbr.rel (0) target = $region13
    $region12: #{tpu_custom_call.1} parent=1 // pred_region
      %38 = vsyncadd [#allocation6], 0
      %s40 = sshll.u32 %s2, 4
      %s41 = int_to_ptr.hbm [resolvable:$true] %s40
      %s42 = sshll.u32 [#allocation7], 4
      %s43 = int_to_ptr.vmem [resolvable:$true] %s42
      %45 = dma.hbm_to_vmem [thread:$0]  %s41, 64, %s43, [#allocation6]
    $region13: #{tpu_custom_call.1} parent=1 // pred_fallthru
      _
    // Predicated region
    $region14: #{tpu_custom_call.1} parent=1 // pred_check
      _
    $region15: #{tpu_custom_call.1} parent=1 // pred_check_branch
      %47 = sbr.rel (0) target = $region17
    $region16: #{tpu_custom_call.1} parent=1 // pred_region
      %49 = dma.done [#allocation3], 128
    $region17: #{tpu_custom_call.1} parent=1 // pred_fallthru
      _
    // Predicated region
    $region18: #{tpu_custom_call.1} parent=1 // pred_check
      _
    $region19: #{tpu_custom_call.1} parent=1 // pred_check_branch
      %51 = sbr.rel (0) target = $region21
    $region20: #{tpu_custom_call.1} parent=1 // pred_region
      %53 = dma.done [#allocation6], 2048
    $region21: #{tpu_custom_call.1} parent=1 // pred_fallthru
      _
    // Predicated region
    $region22: #{tpu_custom_call.1} parent=1 // pred_check
      _
    $region23: #{tpu_custom_call.1} parent=1 // pred_check_branch
      %55 = sbr.rel (0) target = $region25
    $region24: #{tpu_custom_call.1} parent=1 // pred_region
      %57 = dma.done [#allocation6], 64
    $region25: #{tpu_custom_call.1} parent=1 // pred_fallthru
      _
    %v58 = vld [vmem:[#allocation2] sm:$0xff]
    %v59 = vld [vmem:[#allocation7] sm:$0x1]
    %v60 = vld [vmem:[#allocation7 + $0x2] sm:$0x1]
    %v61 = vld [vmem:[#allocation7 + $0x3] sm:$0x1]
    %v62 = vld [vmem:[#allocation5] sm:$0xff]
    %v63 = vld [vmem:[#allocation5 + $0x8] sm:$0xff]
    %v64 = vld [vmem:[#allocation5 + $0x10] sm:$0xff]
    %v65 = vld [vmem:[#allocation5 + $0x18] sm:$0xff]
    %v66 = vld [vmem:[#allocation5 + $0x20] sm:$0xff]
    %v67 = vld [vmem:[#allocation5 + $0x28] sm:$0xff]
    %v68 = vld [vmem:[#allocation5 + $0x30] sm:$0xff]
    %v69 = vld [vmem:[#allocation5 + $0x38] sm:$0xff]
    %v70 = vld [vmem:[#allocation5 + $0x40] sm:$0xff]
    %v71 = vld [vmem:[#allocation5 + $0x48] sm:$0xff]
    %v72 = vld [vmem:[#allocation5 + $0x50] sm:$0xff]
    %v73 = vld [vmem:[#allocation5 + $0x58] sm:$0xff]
    %v74 = vld [vmem:[#allocation5 + $0x60] sm:$0xff]
    %v75 = vld [vmem:[#allocation5 + $0x68] sm:$0xff]
    %v76 = vld [vmem:[#allocation5 + $0x70] sm:$0xff]
    %v77 = vld [vmem:[#allocation5 + $0x78] sm:$0xff]
    %v78 = vperm.slane %v59, 0
    %79 = vmatpush.msra.mxu0 %v77
    %80 = vmatpush.msra.mxu0 %v76
    %81 = vmatpush.msra.mxu0 %v75
    %82 = vmatpush.msra.mxu0 %v74
    %83 = vmatpush.msra.mxu0 %v73
    %84 = vmatpush.msra.mxu0 %v72
    %85 = vmatpush.msra.mxu0 %v71
    %86 = vmatpush.msra.mxu0 %v70
    %87 = vmatpush.msra.mxu0 %v69
    %88 = vmatpush.msra.mxu0 %v68
    %89 = vmatpush.msra.mxu0 %v67
    %90 = vmatpush.msra.mxu0 %v66
    %91 = vmatpush.msra.mxu0 %v65
    %92 = vmatpush.msra.mxu0 %v64
    %93 = vmatpush.msra.mxu0 %v63
    %94 = vmatpush.msra.mxu0 %v62
    %95 = vmatmul.f32.gmra.mxu0 %v58
    %v96 = vpop.f32.mrf.mxu0
    %v97 = vadd.f32 %v78, %v96
    %98 = vdwg.mxu0
    %v99 = vmax.f32 %v97, 0.0
    %v100 = vrot.slane %v99, 4
    %v101 = vadd.f32 %v99, %v100
    %v102 = vrot.slane %v101, 2
    %v103 = vadd.f32 %v101, %v102
    %v104 = vrot.slane %v103, 1
    %v105 = vadd.f32 %v103, %v104
    %v106 = vrcp.pop 8.0
    %v107 = vmul.f32 8.0, %v106
    %v108 = vsub.f32 1.0, %v107
    %v109 = vmul.f32 %v106, %v108
    %v110 = vadd.f32 %v106, %v109
    %vm111 = vweird.f32 %v106
    %v112 = vsel %vm111, %v106, %v110
    %v113 = vmul.f32 %v105, %v112
    %v114 = vsub.f32 %v99, %v113
    %v115 = vmul.f32 %v114, %v114
    %v116 = vrot.slane %v115, 4
    %v117 = vadd.f32 %v115, %v116
    %v118 = vrot.slane %v117, 2
    %v119 = vadd.f32 %v117, %v118
    %v120 = vrot.slane %v119, 1
    %v121 = vadd.f32 %v119, %v120
    %v122 = vmul.f32 %v121, %v112
    %v123 = vadd.f32 %v122, 1e-05
    %v124 = vrsqrt.pop %v123
    %v125 = vmul.f32 %v124, %v123
    %v126 = vmul.f32 %v125, %v124
    %v127 = vmul.f32 0.5, %v126
    %v128 = vsub.f32 1.5, %v127
    %v129 = vmul.f32 %v124, %v128
    %vm130 = vweird.f32 %v123
    %vm131 = vweird.f32 %v124
    %vm132 = vmor %vm130, %vm131
    %v133 = vsel %vm132, %v124, %v129
    %v134 = vmul.f32 %v133, %v60
    %v135 = vperm.slane %v134, 0
    %v136 = vmul.f32 %v114, %v135
    %v137 = vperm.slane %v61, 0
    %v138 = vadd.f32 %v136, %v137
    %139 = vst [vmem:[#allocation8] sm:$0xff] %v138
    // Predicated region
    $region26: #{tpu_custom_call.1} parent=1 // pred_check
      _
    $region27: #{tpu_custom_call.1} parent=1 // pred_check_branch
      %141 = sbr.rel (0) target = $region29
    $region28: #{tpu_custom_call.1} parent=1 // pred_region
      %143 = vsyncadd [#allocation4], 0
      %s145 = sshll.u32 [#allocation8], 4
      %s146 = int_to_ptr.vmem [resolvable:$true] %s145
      %s147 = sshll.u32 %s3, 4
      %s148 = int_to_ptr.hbm [resolvable:$true] %s147
      %150 = dma.vmem_to_hbm [thread:$0]  %s146, 128, %s148, [#allocation4]
    $region29: #{tpu_custom_call.1} parent=1 // pred_fallthru
      _
    // Predicated region
    $region30: #{tpu_custom_call.1} parent=1 // pred_check
      _
    $region31: #{tpu_custom_call.1} parent=1 // pred_check_branch
      %152 = sbr.rel (0) target = $region33
    $region32: #{tpu_custom_call.1} parent=1 // pred_region
      %154 = dma.done [#allocation4], 128
    $region33: #{tpu_custom_call.1} parent=1 // pred_fallthru
      _
    %155 = vsyncpa [#allocation3], 1
    %156 = vsyncpa [#allocation6], 1
    %157 = vsyncpa [#allocation4], 1

</llo_original>
